<compile_context>
chip_gen: v7x
topology: tpu7x:2x2x1
jax: 0.10.0
libtpu: 0.0.40
codegen_flags: <defaults>
</compile_context>

<pallas_src>
import functools

import jax
import jax.numpy as jnp
from jax.experimental import pallas as pl
from jax.experimental.pallas import tpu as pltpu

_LANE = 128


def _round_up(n, m):
    return ((n + m - 1) // m) * m


def mlp_kernel(x_ref, w1_ref, b1_ref, w2_ref, b2_ref, w3_ref, b3_ref, o_ref):
    """One batch tile: two MXU matmuls + VPU/XLU final layer, lane-dense out."""
    # Layer 1: (tb, Kp) @ (Kp, H) on the MXU, f32 accumulation; bias/ReLU f32.
    h1 = jnp.dot(x_ref[...], w1_ref[...], preferred_element_type=jnp.float32)
    h1 = jnp.maximum(h1 + b1_ref[...], 0.0)

    # Layer 2: (tb, H) @ (H, H).  Only the MXU operands are cast back to the
    # (possibly bf16) compute dtype; elementwise work stays in f32.
    h2 = jnp.dot(h1.astype(w2_ref.dtype), w2_ref[...],
                 preferred_element_type=jnp.float32)
    h2 = jnp.maximum(h2 + b2_ref[...], 0.0)

    # Layer 3 (H -> 1): avoid an N=1 MXU matmul and a lane-sparse (tb, 1)
    # store.  Transpose h2 on the XLU (tile-aligned (tb,128)->(128,tb)) and do
    # a VPU multiply + sublane reduce, producing a lane-dense (1, tb) row.
    h2_t = jnp.transpose(h2)                                        # (H, tb)
    out_row = jnp.sum(h2_t * w3_ref[...], axis=0, keepdims=True)    # (1, tb)
    o_ref[...] = out_row + b3_ref[...]


def _choose_tile(batch, batch_tile):
    tb = min(int(batch_tile), _round_up(batch, _LANE))
    tb = max(_LANE, _round_up(tb, _LANE))
    b_pad = _round_up(batch, tb)
    # Prefer >= 2 grid steps when the batch allows it so that
    # dimension_semantics=("parallel",) can shard the batch axis across v7x's
    # two TensorCores (no effect on single-TC v5e/v6e, still helps pipelining).
    if b_pad // tb < 2 and tb > _LANE:
        tb_half = _round_up(tb // 2, _LANE)
        if _round_up(batch, tb_half) // tb_half >= 2:
            tb = tb_half
            b_pad = _round_up(batch, tb)
    return tb, b_pad


@functools.partial(jax.jit, static_argnames=("batch_tile", "compute_dtype"))
def mlp_forward(x, params, *, batch_tile=1024, compute_dtype=jnp.bfloat16):
    """x: (B, input_size) float32.

    params: dict w1(in,h), b1(1,h), w2(h,h), b2(1,h), w3(h,1), b3(1,1).
    batch_tile: rows per grid step.  ~512-4096 is the sweet spot; keep it
      <= ~4096 on v7x (64 MiB VMEM), larger is fine on v5e/v6e (128 MiB).
    compute_dtype: dtype of the MXU operands (x, w1, w2); accumulation is f32.
      bf16 halves the dominant HBM stream; pass jnp.float32 for exact f32.
    """
    B, in_size = x.shape
    hidden = params["w1"].shape[1]
    out_size = params["w3"].shape[1]
    assert out_size == 1, "kernel specialises the (hidden -> 1) output layer"

    tb, b_pad = _choose_tile(B, batch_tile)
    grid_steps = b_pad // tb

    # Pad features 30 -> 32 (sublane friendly DMA bursts on the dominant x
    # stream) and the batch up to a tile multiple; zero padding is exact.
    in_pad = _round_up(in_size, 16)
    cd = jnp.dtype(compute_dtype)
    x_p = jnp.pad(x, ((0, b_pad - B), (0, in_pad - in_size))).astype(cd)
    w1_p = jnp.pad(params["w1"], ((0, in_pad - in_size), (0, 0))).astype(cd)
    w2_p = params["w2"].astype(cd)
    b1 = params["b1"].astype(jnp.float32)
    b2 = params["b2"].astype(jnp.float32)
    w3 = params["w3"].astype(jnp.float32)   # stays f32: used on the VPU, not MXU
    b3 = params["b3"].astype(jnp.float32)

    flops = 2 * b_pad * (in_pad * hidden + hidden * hidden + hidden)
    bytes_accessed = (b_pad * in_pad * cd.itemsize                   # x
                      + (in_pad + hidden) * hidden * cd.itemsize     # w1, w2
                      + (3 * hidden + 2) * 4                         # b1,b2,w3,b3
                      + b_pad * 4)                                   # out

    out = pl.pallas_call(
        mlp_kernel,
        out_shape=jax.ShapeDtypeStruct((grid_steps, 1, tb), jnp.float32),
        grid_spec=pltpu.PrefetchScalarGridSpec(
            num_scalar_prefetch=0,
            grid=(grid_steps,),
            in_specs=[
                pl.BlockSpec((tb, in_pad), lambda i: (i, 0)),        # x tile
                pl.BlockSpec((in_pad, hidden), lambda i: (0, 0)),    # w1 (resident)
                pl.BlockSpec((1, hidden), lambda i: (0, 0)),         # b1
                pl.BlockSpec((hidden, hidden), lambda i: (0, 0)),    # w2 (resident)
                pl.BlockSpec((1, hidden), lambda i: (0, 0)),         # b2
                pl.BlockSpec((hidden, out_size), lambda i: (0, 0)),  # w3
                pl.BlockSpec((1, out_size), lambda i: (0, 0)),       # b3
            ],
            # Lane-dense output: each grid step writes one (1, tb) row of a
            # (grid_steps, 1, tb) slab -> unmasked 128-lane stores instead of
            # masked 1-lane stores.
            out_specs=pl.BlockSpec((None, 1, tb), lambda i: (i, 0, 0)),
        ),
        compiler_params=pltpu.CompilerParams(
            dimension_semantics=("parallel",),
        ),
        cost_estimate=pl.CostEstimate(
            flops=flops, transcendentals=0, bytes_accessed=bytes_accessed),
    )(x_p, w1_p, b1, w2_p, b2, w3, b3)

    # (grid_steps, 1, tb) -> (b_pad, 1) -> (B, 1)
    return out.reshape(b_pad, 1)[:B]


def init_params(key, input_size=30, hidden_size=128, output_size=1):
    """Deterministic synthetic parameters (shapes match the PyTorch module)."""
    k1, k2, k3, k4, k5, k6 = jax.random.split(key, 6)
    scale1 = 1.0 / jnp.sqrt(input_size)
    scale2 = 1.0 / jnp.sqrt(hidden_size)
    return {
        "w1": jax.random.uniform(k1, (input_size, hidden_size), jnp.float32,
                                 -scale1, scale1),
        "b1": jax.random.uniform(k2, (1, hidden_size), jnp.float32,
                                 -scale1, scale1),
        "w2": jax.random.uniform(k3, (hidden_size, hidden_size), jnp.float32,
                                 -scale2, scale2),
        "b2": jax.random.uniform(k4, (1, hidden_size), jnp.float32,
                                 -scale2, scale2),
        "w3": jax.random.uniform(k5, (hidden_size, output_size), jnp.float32,
                                 -scale2, scale2),
        "b3": jax.random.uniform(k6, (1, output_size), jnp.float32,
                                 -scale2, scale2),
    }


def mlp_reference(x, p, compute_dtype=jnp.bfloat16):
    """Pure-JAX reference mirroring the kernel's operand dtypes (f32 accum)."""
    cd = jnp.dtype(compute_dtype)
    h1 = jnp.maximum(
        jnp.dot(x.astype(cd), p["w1"].astype(cd),
                preferred_element_type=jnp.float32) + p["b1"], 0.0)
    h2 = jnp.maximum(
        jnp.dot(h1.astype(cd), p["w2"].astype(cd),
                preferred_element_type=jnp.float32) + p["b2"], 0.0)
    return jnp.dot(h2, p["w3"]) + p["b3"]          # final layer in f32


if __name__ == "__main__":
    key = jax.random.PRNGKey(0)
    kx, kp = jax.random.split(key)

    B, INPUT, HIDDEN, OUT = 300, 30, 128, 1   # non-multiple batch -> exercises padding
    x = jax.random.normal(kx, (B, INPUT), dtype=jnp.float32)
    params = init_params(kp, INPUT, HIDDEN, OUT)

    # Optimized path: bf16 MXU operands, batch split into 2 "parallel" tiles.
    out = jax.block_until_ready(
        mlp_forward(x, params, batch_tile=256, compute_dtype=jnp.bfloat16))
    ref = mlp_reference(x, params, compute_dtype=jnp.bfloat16)
    assert out.shape == (B, OUT), out.shape
    assert jnp.allclose(out, ref, atol=2e-3, rtol=2e-3), "bf16 path mismatch"

    # Full-f32 path (v5e-friendly), 3 grid steps, tighter tolerance.
    out32 = jax.block_until_ready(
        mlp_forward(x, params, batch_tile=128, compute_dtype=jnp.float32))
    ref32 = mlp_reference(x, params, compute_dtype=jnp.float32)
    assert out32.shape == (B, OUT), out32.shape
    assert jnp.allclose(out32, ref32, atol=1e-4, rtol=1e-4), "f32 path mismatch"

    print("KERNEL_OK")
</pallas_src>

<mosaic_0001>
module attributes {stable_mosaic.version = 11 : i64} {
  func.func @mlp_kernel(%arg0: i32, %arg1: memref<256x32xbf16, #tpu.memory_space<vmem>>, %arg2: memref<32x128xbf16, #tpu.memory_space<vmem>>, %arg3: memref<1x128xf32, #tpu.memory_space<vmem>>, %arg4: memref<128x128xbf16, #tpu.memory_space<vmem>>, %arg5: memref<1x128xf32, #tpu.memory_space<vmem>>, %arg6: memref<128x1xf32, #tpu.memory_space<vmem>>, %arg7: memref<1x1xf32, #tpu.memory_space<vmem>>, %arg8: memref<1x1x256xf32, #tpu.memory_space<vmem>>) attributes {dimension_semantics = [#tpu.dimension_semantics<parallel>], iteration_bounds = array<i64: 2>, scalar_prefetch = 0 : i64, scratch_operands = 0 : i64, tpu.core_type = #tpu.core_type<tc>, window_params = [{transform_indices = @transform_0, window_bounds = array<i64: 256, 32>}, {pipeline_mode = #tpu.pipeline_mode<synchronous>, transform_indices = @transform_1, window_bounds = array<i64: 32, 128>}, {pipeline_mode = #tpu.pipeline_mode<synchronous>, transform_indices = @transform_2, window_bounds = array<i64: 1, 128>}, {pipeline_mode = #tpu.pipeline_mode<synchronous>, transform_indices = @transform_3, window_bounds = array<i64: 128, 128>}, {pipeline_mode = #tpu.pipeline_mode<synchronous>, transform_indices = @transform_4, window_bounds = array<i64: 1, 128>}, {pipeline_mode = #tpu.pipeline_mode<synchronous>, transform_indices = @transform_5, window_bounds = array<i64: 128, 1>}, {pipeline_mode = #tpu.pipeline_mode<synchronous>, transform_indices = @transform_6, window_bounds = array<i64: 1, 1>}, {transform_indices = @transform_7, window_bounds = array<i64: 1, 1, 256>}]} {
    %c0 = arith.constant 0 : index
    %c0_0 = arith.constant 0 : index
    %0 = vector.load %arg1[%c0, %c0_0] : memref<256x32xbf16, #tpu.memory_space<vmem>>, vector<256x32xbf16>
    %c0_1 = arith.constant 0 : index
    %c0_2 = arith.constant 0 : index
    %1 = vector.load %arg2[%c0_1, %c0_2] : memref<32x128xbf16, #tpu.memory_space<vmem>>, vector<32x128xbf16>
    %cst = arith.constant dense<0.000000e+00> : vector<256x128xf32>
    %2 = tpu.matmul %0, %1, %cst {dimension_numbers = #tpu.dot_dimension_numbers<[1], [0], [0], [1], [0, 0, 1, 1], [], []>} : vector<256x32xbf16>, vector<32x128xbf16>, vector<256x128xf32> -> vector<256x128xf32>
    %c0_3 = arith.constant 0 : index
    %c0_4 = arith.constant 0 : index
    %3 = vector.load %arg3[%c0_3, %c0_4] : memref<1x128xf32, #tpu.memory_space<vmem>>, vector<1x128xf32>
    %4 = vector.broadcast %3 : vector<1x128xf32> to vector<256x128xf32>
    %5 = arith.addf %2, %4 : vector<256x128xf32>
    %cst_5 = arith.constant 0.000000e+00 : f32
    %6 = vector.broadcast %cst_5 : f32 to vector<256x128xf32>
    %7 = arith.maximumf %5, %6 : vector<256x128xf32>
    %8 = arith.truncf %7 : vector<256x128xf32> to vector<256x128xbf16>
    %c0_6 = arith.constant 0 : index
    %c0_7 = arith.constant 0 : index
    %9 = vector.load %arg4[%c0_6, %c0_7] : memref<128x128xbf16, #tpu.memory_space<vmem>>, vector<128x128xbf16>
    %cst_8 = arith.constant dense<0.000000e+00> : vector<256x128xf32>
    %10 = tpu.matmul %8, %9, %cst_8 {dimension_numbers = #tpu.dot_dimension_numbers<[1], [0], [0], [1], [0, 0, 1, 1], [], []>} : vector<256x128xbf16>, vector<128x128xbf16>, vector<256x128xf32> -> vector<256x128xf32>
    %c0_9 = arith.constant 0 : index
    %c0_10 = arith.constant 0 : index
    %11 = vector.load %arg5[%c0_9, %c0_10] : memref<1x128xf32, #tpu.memory_space<vmem>>, vector<1x128xf32>
    %12 = vector.broadcast %11 : vector<1x128xf32> to vector<256x128xf32>
    %13 = arith.addf %10, %12 : vector<256x128xf32>
    %cst_11 = arith.constant 0.000000e+00 : f32
    %14 = vector.broadcast %cst_11 : f32 to vector<256x128xf32>
    %15 = arith.maximumf %13, %14 : vector<256x128xf32>
    %16 = tpu.transpose %15, [1, 0] : vector<256x128xf32> -> vector<128x256xf32>
    %c0_12 = arith.constant 0 : index
    %c0_13 = arith.constant 0 : index
    %17 = vector.load %arg6[%c0_12, %c0_13] : memref<128x1xf32, #tpu.memory_space<vmem>>, vector<128x1xf32>
    %18 = vector.broadcast %17 : vector<128x1xf32> to vector<128x256xf32>
    %19 = arith.mulf %16, %18 : vector<128x256xf32>
    %cst_14 = arith.constant dense<0.000000e+00> : vector<256xf32>
    %20 = vector.multi_reduction <add>, %19, %cst_14 [0] : vector<128x256xf32> to vector<256xf32>
    %21 = vector.shape_cast %20 : vector<256xf32> to vector<1x256xf32>
    %c0_15 = arith.constant 0 : index
    %c0_16 = arith.constant 0 : index
    %22 = vector.load %arg7[%c0_15, %c0_16] : memref<1x1xf32, #tpu.memory_space<vmem>>, vector<1x1xf32>
    %23 = vector.broadcast %22 : vector<1x1xf32> to vector<1x256xf32>
    %24 = arith.addf %21, %23 : vector<1x256xf32>
    %c0_17 = arith.constant 0 : index
    %c0_18 = arith.constant 0 : index
    %c0_19 = arith.constant 0 : index
    %25 = vector.load %arg8[%c0_17, %c0_18, %c0_19] : memref<1x1x256xf32, #tpu.memory_space<vmem>>, vector<1x1x256xf32>
    %26 = vector.shape_cast %25 : vector<1x1x256xf32> to vector<1x256xf32>
    %27 = vector.shape_cast %24 : vector<1x256xf32> to vector<1x1x256xf32>
    tpu.vector_store %arg8[%c0_17, %c0_18, %c0_19], %27 {strides = array<i32>} : memref<1x1x256xf32, #tpu.memory_space<vmem>>, vector<1x1x256xf32>,
    return
  }
  func.func @transform_0(%arg0: i32) -> (i32, i32) {
    %c0_i32 = arith.constant 0 : i32
    %c0_i32_0 = arith.constant 0 : i32
    return %arg0, %c0_i32 : i32, i32
  }
  func.func @transform_1(%arg0: i32) -> (i32, i32) {
    %c0_i32 = arith.constant 0 : i32
    %c0_i32_0 = arith.constant 0 : i32
    %c0_i32_1 = arith.constant 0 : i32
    return %c0_i32, %c0_i32_0 : i32, i32
  }
  func.func @transform_2(%arg0: i32) -> (i32, i32) {
    %c0_i32 = arith.constant 0 : i32
    %c0_i32_0 = arith.constant 0 : i32
    %c0_i32_1 = arith.constant 0 : i32
    return %c0_i32, %c0_i32_0 : i32, i32
  }
  func.func @transform_3(%arg0: i32) -> (i32, i32) {
    %c0_i32 = arith.constant 0 : i32
    %c0_i32_0 = arith.constant 0 : i32
    %c0_i32_1 = arith.constant 0 : i32
    return %c0_i32, %c0_i32_0 : i32, i32
  }
  func.func @transform_4(%arg0: i32) -> (i32, i32) {
    %c0_i32 = arith.constant 0 : i32
    %c0_i32_0 = arith.constant 0 : i32
    %c0_i32_1 = arith.constant 0 : i32
    return %c0_i32, %c0_i32_0 : i32, i32
  }
  func.func @transform_5(%arg0: i32) -> (i32, i32) {
    %c0_i32 = arith.constant 0 : i32
    %c0_i32_0 = arith.constant 0 : i32
    %c0_i32_1 = arith.constant 0 : i32
    return %c0_i32, %c0_i32_0 : i32, i32
  }
  func.func @transform_6(%arg0: i32) -> (i32, i32) {
    %c0_i32 = arith.constant 0 : i32
    %c0_i32_0 = arith.constant 0 : i32
    %c0_i32_1 = arith.constant 0 : i32
    return %c0_i32, %c0_i32_0 : i32, i32
  }
  func.func @transform_7(%arg0: i32) -> (i32, i32, i32) {
    %c0_i32 = arith.constant 0 : i32
    %c0_i32_0 = arith.constant 0 : i32
    %c0_i32_1 = arith.constant 0 : i32
    return %arg0, %c0_i32, %c0_i32_0 : i32, i32, i32
  }
}

</mosaic_0001>

<llo_original>
// kernel: mlp_forward.1
$region0: #{mlp_forward.1}
  #allocation0 [shape = 'u32[]', space=smem, size = 0x4, offset = 0x4, fixed_abs, tag = 'smem constant byte address 0x4 - core index']
  #allocation1 [shape = 'u32[144,128]{1,0:T(1,128)}', space=vmem, size = 0x12000, scoped, tag = 'internal scratch']
  #allocation2 [shape = 'f32[1,1]{1,0:T(1,128)S(1)}', space=vmem, size = 0x200, scoped, tag = 'scoped memory for mlp_forward.1']
  %s0 = inlined_call_operand.vmem [shape: bf16[512,32], index: 0, kind: input, shape index: {}]
  %s1 = inlined_call_operand.vmem [shape: bf16[32,128], index: 1, kind: input, shape index: {}]
  %s2 = inlined_call_operand.vmem [shape: f32[1,128], index: 2, kind: input, shape index: {}]
  %s3 = inlined_call_operand.vmem [shape: bf16[128,128], index: 3, kind: input, shape index: {}]
  %s4 = inlined_call_operand.vmem [shape: f32[1,128], index: 4, kind: input, shape index: {}]
  %s5 = inlined_call_operand.vmem [shape: f32[128,1], index: 5, kind: input, shape index: {}]
  %s6 = inlined_call_operand.<no memory space> [shape: f32[1,1], index: 6, kind: input, shape index: {}]
  %s7 = inlined_call_operand.vmem [shape: f32[2,1,256], index: 7, kind: output, shape index: {}]
  %s8 = sld [smem:[#allocation0]]
  $region61: #{mlp_forward.1} parent=0
    _
  %s10 = ssub.s32 1, %s8
  %s11 = scalar_select 0, %s10, %s8
  %v12 = vstv %s6
  %13 = vst [vmem:[#allocation2] sm:$0x1] %v12
  loop: start=0, step=1, limit=4
  $region2: #{mlp_forward.1} parent=0 // loop_pre_header
    _
  $region3: #{mlp_forward.1} parent=0 // loop_header
    %s15 = sphi 0, %s19
    %p16 = scmp.ge.s32.totalorder %s15, 4
    %s25 = sphi 0, %s27
    %s28 = sphi 0, %s25
    %s29 = sphi 0, %s28
    %s45 = sphi 0, %s29
    %s49 = sphi 0, %s49
    %s51 = sphi 0, %s49
    %s52 = sphi 0, %s51
    %s66 = sphi 0, %s52
    %s70 = sphi 0, %s70
    %s72 = sphi 0, %s70
    %s73 = sphi 0, %s72
    %s87 = sphi 0, %s73
    %s91 = sphi 0, %s91
    %s93 = sphi 0, %s91
    %s94 = sphi 0, %s93
    %s108 = sphi 0, %s94
    %s112 = sphi 0, %s112
    %s114 = sphi 0, %s112
    %s115 = sphi 0, %s114
    %s129 = sphi 0, %s115
    %s133 = sphi 0, %s133
    %s135 = sphi 0, %s133
    %s136 = sphi 0, %s135
    %s150 = sphi 0, %s136
    %s154 = sphi 0, %s154
    %s156 = sphi 0, %s154
    %s157 = sphi 0, %s156
    %s171 = sphi 0, %s157
    %s177 = sphi 0, %s179
    %s180 = sphi 0, %s177
    %s181 = sphi 0, %s180
    %s197 = sphi 0, %s181
  $region4: #{mlp_forward.1} parent=0 // loop_header_branch
    %18 = sbr.rel (%p16) target = $region8
  $region5: #{mlp_forward.1} parent=0 // loop_body
    %s20 = ssub.s32 %s15, 1
    %s21 = ssub.s32 %s15, 2
    %s22 = sadd.s32 %s15, 1
    %s23 = ssub.s32 %s15, %s22
    %p24 = scmp.eq.s32.totalorder %s23, 0
    %s26 = sadd.s32 %s25, 1
    %s27 = scalar_select %p24, %s25, %s26
    %p30 = pneg %p24
    %p31 = scmp.eq.s32.totalorder %s15, 1
    %p32 = por %p30, %p31
    %p33 = scmp.ne.s32.totalorder %s25, %s28
    %p34 = scmp.eq.s32.totalorder %s15, 0
    %p35 = por %p33, %p34
    %p36 = scmp.ne.s32.totalorder %s25, %s28
    %p37 = scmp.eq.s32.totalorder %s20, 1
    %p38 = por %p36, %p37
    %p39 = scmp.ne.s32.totalorder %s28, %s29
    %p40 = scmp.eq.s32.totalorder %s20, 0
    %p41 = por %p39, %p40
    %p42 = scmp.ne.s32.totalorder %s28, %s29
    %p43 = scmp.eq.s32.totalorder %s21, 1
    %p44 = por %p42, %p43
    %p46 = scmp.ne.s32.totalorder %s29, %s45
    %p47 = scmp.eq.s32.totalorder %s21, 0
    %p48 = por %p46, %p47
    %s50 = sadd.s32 %s49, 1
    %p53 = scmp.eq.s32.totalorder %s15, 1
    %p54 = scmp.ne.s32.totalorder %s49, %s51
    %p55 = scmp.eq.s32.totalorder %s15, 0
    %p56 = por %p54, %p55
    %p57 = scmp.ne.s32.totalorder %s49, %s51
    %p58 = scmp.eq.s32.totalorder %s20, 1
    %p59 = por %p57, %p58
    %p60 = scmp.ne.s32.totalorder %s51, %s52
    %p61 = scmp.eq.s32.totalorder %s20, 0
    %p62 = por %p60, %p61
    %p63 = scmp.ne.s32.totalorder %s51, %s52
    %p64 = scmp.eq.s32.totalorder %s21, 1
    %p65 = por %p63, %p64
    %p67 = scmp.ne.s32.totalorder %s52, %s66
    %p68 = scmp.eq.s32.totalorder %s21, 0
    %p69 = por %p67, %p68
    %s71 = sadd.s32 %s70, 1
    %p74 = scmp.eq.s32.totalorder %s15, 1
    %p75 = scmp.ne.s32.totalorder %s70, %s72
    %p76 = scmp.eq.s32.totalorder %s15, 0
    %p77 = por %p75, %p76
    %p78 = scmp.ne.s32.totalorder %s70, %s72
    %p79 = scmp.eq.s32.totalorder %s20, 1
    %p80 = por %p78, %p79
    %p81 = scmp.ne.s32.totalorder %s72, %s73
    %p82 = scmp.eq.s32.totalorder %s20, 0
    %p83 = por %p81, %p82
    %p84 = scmp.ne.s32.totalorder %s72, %s73
    %p85 = scmp.eq.s32.totalorder %s21, 1
    %p86 = por %p84, %p85
    %p88 = scmp.ne.s32.totalorder %s73, %s87
    %p89 = scmp.eq.s32.totalorder %s21, 0
    %p90 = por %p88, %p89
    %s92 = sadd.s32 %s91, 1
    %p95 = scmp.eq.s32.totalorder %s15, 1
    %p96 = scmp.ne.s32.totalorder %s91, %s93
    %p97 = scmp.eq.s32.totalorder %s15, 0
    %p98 = por %p96, %p97
    %p99 = scmp.ne.s32.totalorder %s91, %s93
    %p100 = scmp.eq.s32.totalorder %s20, 1
    %p101 = por %p99, %p100
    %p102 = scmp.ne.s32.totalorder %s93, %s94
    %p103 = scmp.eq.s32.totalorder %s20, 0
    %p104 = por %p102, %p103
    %p105 = scmp.ne.s32.totalorder %s93, %s94
    %p106 = scmp.eq.s32.totalorder %s21, 1
    %p107 = por %p105, %p106
    %p109 = scmp.ne.s32.totalorder %s94, %s108
    %p110 = scmp.eq.s32.totalorder %s21, 0
    %p111 = por %p109, %p110
    %s113 = sadd.s32 %s112, 1
    %p116 = scmp.eq.s32.totalorder %s15, 1
    %p117 = scmp.ne.s32.totalorder %s112, %s114
    %p118 = scmp.eq.s32.totalorder %s15, 0
    %p119 = por %p117, %p118
    %p120 = scmp.ne.s32.totalorder %s112, %s114
    %p121 = scmp.eq.s32.totalorder %s20, 1
    %p122 = por %p120, %p121
    %p123 = scmp.ne.s32.totalorder %s114, %s115
    %p124 = scmp.eq.s32.totalorder %s20, 0
    %p125 = por %p123, %p124
    %p126 = scmp.ne.s32.totalorder %s114, %s115
    %p127 = scmp.eq.s32.totalorder %s21, 1
    %p128 = por %p126, %p127
    %p130 = scmp.ne.s32.totalorder %s115, %s129
    %p131 = scmp.eq.s32.totalorder %s21, 0
    %p132 = por %p130, %p131
    %s134 = sadd.s32 %s133, 1
    %p137 = scmp.eq.s32.totalorder %s15, 1
    %p138 = scmp.ne.s32.totalorder %s133, %s135
    %p139 = scmp.eq.s32.totalorder %s15, 0
    %p140 = por %p138, %p139
    %p141 = scmp.ne.s32.totalorder %s133, %s135
    %p142 = scmp.eq.s32.totalorder %s20, 1
    %p143 = por %p141, %p142
    %p144 = scmp.ne.s32.totalorder %s135, %s136
    %p145 = scmp.eq.s32.totalorder %s20, 0
    %p146 = por %p144, %p145
    %p147 = scmp.ne.s32.totalorder %s135, %s136
    %p148 = scmp.eq.s32.totalorder %s21, 1
    %p149 = por %p147, %p148
    %p151 = scmp.ne.s32.totalorder %s136, %s150
    %p152 = scmp.eq.s32.totalorder %s21, 0
    %p153 = por %p151, %p152
    %s155 = sadd.s32 %s154, 1
    %p158 = scmp.eq.s32.totalorder %s15, 1
    %p159 = scmp.ne.s32.totalorder %s154, %s156
    %p160 = scmp.eq.s32.totalorder %s15, 0
    %p161 = por %p159, %p160
    %p162 = scmp.ne.s32.totalorder %s154, %s156
    %p163 = scmp.eq.s32.totalorder %s20, 1
    %p164 = por %p162, %p163
    %p165 = scmp.ne.s32.totalorder %s156, %s157
    %p166 = scmp.eq.s32.totalorder %s20, 0
    %p167 = por %p165, %p166
    %p168 = scmp.ne.s32.totalorder %s156, %s157
    %p169 = scmp.eq.s32.totalorder %s21, 1
    %p170 = por %p168, %p169
    %p172 = scmp.ne.s32.totalorder %s157, %s171
    %p173 = scmp.eq.s32.totalorder %s21, 0
    %p174 = por %p172, %p173
    %s175 = ssub.s32 %s15, %s22
    %p176 = scmp.eq.s32.totalorder %s175, 0
    %s178 = sadd.s32 %s177, 1
    %s179 = scalar_select %p176, %s177, %s178
    %p182 = pneg %p176
    %p183 = scmp.eq.s32.totalorder %s15, 1
    %p184 = por %p182, %p183
    %p185 = scmp.ne.s32.totalorder %s177, %s180
    %p186 = scmp.eq.s32.totalorder %s15, 0
    %p187 = por %p185, %p186
    %p188 = scmp.ne.s32.totalorder %s177, %s180
    %p189 = scmp.eq.s32.totalorder %s20, 1
    %p190 = por %p188, %p189
    %p191 = scmp.ne.s32.totalorder %s180, %s181
    %p192 = scmp.eq.s32.totalorder %s20, 0
    %p193 = por %p191, %p192
    %p194 = scmp.ne.s32.totalorder %s180, %s181
    %p195 = scmp.eq.s32.totalorder %s21, 1
    %p196 = por %p194, %p195
    %p198 = scmp.ne.s32.totalorder %s181, %s197
    %p199 = scmp.eq.s32.totalorder %s21, 0
    %p200 = por %p198, %p199
    %p201 = scmp.le.s32.totalorder 1, %s15
    %p202 = scmp.lt.s32.totalorder %s15, 3
    %p203 = pnand %p201, %p202
    %p204 = pneg %p203
    // Predicated region
    $region9: #{mlp_forward.1} parent=5 // pred_check
      _
    $region10: #{mlp_forward.1} parent=5 // pred_check_branch
      %206 = sbr.rel (%p203) target = $region12
    $region11: #{mlp_forward.1} parent=5 // pred_region
      %s207 = ssub.s32 %s15, 1
      // Predicated region
      $region13: #{mlp_forward.1} parent=11 // pred_check
        %p208 = pneg %p62
      $region14: #{mlp_forward.1} parent=11 // pred_check_branch
        %210 = sbr.rel (%p208) target = $region16
      $region15: #{mlp_forward.1} parent=11 // pred_region
        _
      $region16: #{mlp_forward.1} parent=11 // pred_fallthru
        _
      // Predicated region
      $region17: #{mlp_forward.1} parent=11 // pred_check
        %p211 = pneg %p83
      $region18: #{mlp_forward.1} parent=11 // pred_check_branch
        %213 = sbr.rel (%p211) target = $region20
      $region19: #{mlp_forward.1} parent=11 // pred_region
        _
      $region20: #{mlp_forward.1} parent=11 // pred_fallthru
        _
      // Predicated region
      $region21: #{mlp_forward.1} parent=11 // pred_check
        %p214 = pneg %p104
      $region22: #{mlp_forward.1} parent=11 // pred_check_branch
        %216 = sbr.rel (%p214) target = $region24
      $region23: #{mlp_forward.1} parent=11 // pred_region
        _
      $region24: #{mlp_forward.1} parent=11 // pred_fallthru
        _
      // Predicated region
      $region25: #{mlp_forward.1} parent=11 // pred_check
        %p217 = pneg %p125
      $region26: #{mlp_forward.1} parent=11 // pred_check_branch
        %219 = sbr.rel (%p217) target = $region28
      $region27: #{mlp_forward.1} parent=11 // pred_region
        _
      $region28: #{mlp_forward.1} parent=11 // pred_fallthru
        _
      // Predicated region
      $region29: #{mlp_forward.1} parent=11 // pred_check
        %p220 = pneg %p146
      $region30: #{mlp_forward.1} parent=11 // pred_check_branch
        %222 = sbr.rel (%p220) target = $region32
      $region31: #{mlp_forward.1} parent=11 // pred_region
        _
      $region32: #{mlp_forward.1} parent=11 // pred_fallthru
        _
      // Predicated region
      $region33: #{mlp_forward.1} parent=11 // pred_check
        %p223 = pneg %p167
      $region34: #{mlp_forward.1} parent=11 // pred_check_branch
        %225 = sbr.rel (%p223) target = $region36
      $region35: #{mlp_forward.1} parent=11 // pred_region
        _
      $region36: #{mlp_forward.1} parent=11 // pred_fallthru
        _
    $region12: #{mlp_forward.1} parent=5 // pred_fallthru
      _
    %p226 = scmp.lt.s32.totalorder %s15, 2
    // Predicated region
    $region37: #{mlp_forward.1} parent=5 // pred_check
      %p227 = pneg %p226
    $region38: #{mlp_forward.1} parent=5 // pred_check_branch
      %229 = sbr.rel (%p227) target = $region40
    $region39: #{mlp_forward.1} parent=5 // pred_region
      // Predicated region
      $region41: #{mlp_forward.1} parent=39 // pred_check
        %p230 = pneg %p35
      $region42: #{mlp_forward.1} parent=39 // pred_check_branch
        %232 = sbr.rel (%p230) target = $region44
      $region43: #{mlp_forward.1} parent=39 // pred_region
        %s233 = smul.u32 32, %s15
        %p234 = scmp.lt.s32.totalorder %s233, 63
        %s235 = scalar_select %p234, %s233, 63
        %s236 = smul.addr %s235, 4
        %s237 = scalar_lea.vmem %s0, %s236
        %s238 = smul.u32 32, %s15
      $region44: #{mlp_forward.1} parent=39 // pred_fallthru
        _
    $region40: #{mlp_forward.1} parent=5 // pred_fallthru
      _
    %p239 = scmp.le.s32.totalorder 1, %s15
    %p240 = scmp.lt.s32.totalorder %s15, 3
    %p241 = pnand %p239, %p240
    %p242 = pneg %p241
    // Predicated region
    $region45: #{mlp_forward.1} parent=5 // pred_check
      _
    $region46: #{mlp_forward.1} parent=5 // pred_check_branch
      %244 = sbr.rel (%p241) target = $region48
    $region47: #{mlp_forward.1} parent=5 // pred_region
      %s245 = ssub.s32 %s15, 1
      %s246 = smul.u32 32, %s20
      %p247 = scmp.lt.s32.totalorder %s246, 63
      %s248 = scalar_select %p247, %s246, 63
      %s249 = smul.addr %s248, 4
      %s250 = scalar_lea.vmem %s0, %s249
      %p251 = pneg %p41
      %p252 = pneg %p38
      %p253 = pneg %p62
      %p254 = pneg %p59
      %p255 = pneg %p83
      %p256 = pneg %p80
      %p257 = pneg %p104
      %p258 = pneg %p101
      %p259 = pneg %p125
      %p260 = pneg %p122
      %p261 = pneg %p146
      %p262 = pneg %p143
      %p263 = pneg %p167
      %p264 = pneg %p164
      %p265 = pneg %p193
      %p266 = pneg %p190
      %p267 = scmp.lt.s32.totalorder %s20, 1
      %s268 = scalar_select %p267, %s20, 1
      %s269 = smul.addr %s268, 2
      %s270 = scalar_lea.vmem %s7, %s269
      %s271 = smul.u32 32, %s20
      %p272 = scmp.lt.s32.totalorder %s271, 63
      %s273 = scalar_select %p272, %s271, 63
      %s274 = smul.addr %s273, 4
      %s275 = scalar_lea.vmem %s0, %s274
      %s276 = smul.u32 32, %s20
      %p277 = scmp.lt.s32.totalorder %s20, 1
      %s278 = scalar_select %p277, %s20, 1
      %s279 = smul.addr %s278, 2
      %s280 = scalar_lea.vmem %s7, %s279
      %v282 = vld [vmem:[%s275] sm:$0xf]
      %v283 = vld [vmem:[%s275 + $0x4] sm:$0xf]
      %v284 = vld [vmem:[%s275 + $0x8] sm:$0xf]
      %v285 = vld [vmem:[%s275 + $0xc] sm:$0xf]
      %v286 = vld [vmem:[%s275 + $0x10] sm:$0xf]
      %v287 = vld [vmem:[%s275 + $0x14] sm:$0xf]
      %v288 = vld [vmem:[%s275 + $0x18] sm:$0xf]
      %v289 = vld [vmem:[%s275 + $0x1c] sm:$0xf]
      %v290 = vld [vmem:[%s275 + $0x20] sm:$0xf]
      %v291 = vld [vmem:[%s275 + $0x24] sm:$0xf]
      %v292 = vld [vmem:[%s275 + $0x28] sm:$0xf]
      %v293 = vld [vmem:[%s275 + $0x2c] sm:$0xf]
      %v294 = vld [vmem:[%s275 + $0x30] sm:$0xf]
      %v295 = vld [vmem:[%s275 + $0x34] sm:$0xf]
      %v296 = vld [vmem:[%s275 + $0x38] sm:$0xf]
      %v297 = vld [vmem:[%s275 + $0x3c] sm:$0xf]
      %v298 = vld [vmem:[%s275 + $0x40] sm:$0xf]
      %v299 = vld [vmem:[%s275 + $0x44] sm:$0xf]
      %v300 = vld [vmem:[%s275 + $0x48] sm:$0xf]
      %v301 = vld [vmem:[%s275 + $0x4c] sm:$0xf]
      %v302 = vld [vmem:[%s275 + $0x50] sm:$0xf]
      %v303 = vld [vmem:[%s275 + $0x54] sm:$0xf]
      %v304 = vld [vmem:[%s275 + $0x58] sm:$0xf]
      %v305 = vld [vmem:[%s275 + $0x5c] sm:$0xf]
      %v306 = vld [vmem:[%s275 + $0x60] sm:$0xf]
      %v307 = vld [vmem:[%s275 + $0x64] sm:$0xf]
      %v308 = vld [vmem:[%s275 + $0x68] sm:$0xf]
      %v309 = vld [vmem:[%s275 + $0x6c] sm:$0xf]
      %v310 = vld [vmem:[%s275 + $0x70] sm:$0xf]
      %v311 = vld [vmem:[%s275 + $0x74] sm:$0xf]
      %v312 = vld [vmem:[%s275 + $0x78] sm:$0xf]
      %v313 = vld [vmem:[%s275 + $0x7c] sm:$0xf]
      %v314 = vld [vmem:[%s1] sm:$0xf]
      %v315 = vld [vmem:[%s1 + $0x4] sm:$0xf]
      %v316 = vld [vmem:[%s1 + $0x8] sm:$0xf]
      %v317 = vld [vmem:[%s1 + $0xc] sm:$0xf]
      %v318 = vld [vmem:[%s2] sm:$0x1]
      %v320 = vlaneseq
      %v321 = vshrl.u32 %v320, 7
      %v322 = vsub.s32 0, %v321
      %v323 = vrot.slane %v318, %v322
      %v357 = vunpack.c.l.b16 %v282
      %v358 = vunpack.c.l.b16 %v283
      %v359 = vunpack.c.l.b16 %v284
      %v360 = vunpack.c.l.b16 %v285
      %v361 = vunpack.c.l.b16 %v286
      %v362 = vunpack.c.l.b16 %v287
      %v363 = vunpack.c.l.b16 %v288
      %v364 = vunpack.c.l.b16 %v289
      %v365 = vunpack.c.l.b16 %v290
      %v366 = vunpack.c.l.b16 %v291
      %v367 = vunpack.c.l.b16 %v292
      %v368 = vunpack.c.l.b16 %v293
      %v369 = vunpack.c.l.b16 %v294
      %v370 = vunpack.c.l.b16 %v295
      %v371 = vunpack.c.l.b16 %v296
      %v372 = vunpack.c.l.b16 %v297
      %v373 = vunpack.c.l.b16 %v298
      %v374 = vunpack.c.l.b16 %v299
      %v375 = vunpack.c.l.b16 %v300
      %v376 = vunpack.c.l.b16 %v301
      %v377 = vunpack.c.l.b16 %v302
      %v378 = vunpack.c.l.b16 %v303
      %v379 = vunpack.c.l.b16 %v304
      %v380 = vunpack.c.l.b16 %v305
      %v381 = vunpack.c.l.b16 %v306
      %v382 = vunpack.c.l.b16 %v307
      %v383 = vunpack.c.l.b16 %v308
      %v384 = vunpack.c.l.b16 %v309
      %v385 = vunpack.c.l.b16 %v310
      %v386 = vunpack.c.l.b16 %v311
      %v387 = vunpack.c.l.b16 %v312
      %v388 = vunpack.c.l.b16 %v313
      %v389 = vpack.c.b16 %v358, %v357
      %v390 = vpack.c.b16 %v360, %v359
      %v391 = vpack.c.b16 %v362, %v361
      %v392 = vpack.c.b16 %v364, %v363
      %v393 = vpack.c.b16 %v366, %v365
      %v394 = vpack.c.b16 %v368, %v367
      %v395 = vpack.c.b16 %v370, %v369
      %v396 = vpack.c.b16 %v372, %v371
      %v397 = vpack.c.b16 %v374, %v373
      %v398 = vpack.c.b16 %v376, %v375
      %v399 = vpack.c.b16 %v378, %v377
      %v400 = vpack.c.b16 %v380, %v379
      %v401 = vpack.c.b16 %v382, %v381
      %v402 = vpack.c.b16 %v384, %v383
      %v403 = vpack.c.b16 %v386, %v385
      %v404 = vpack.c.b16 %v388, %v387
      %v409 = vunpack.c.l.b16 %v314
      %v410 = vunpack.c.l.b16 %v315
      %v411 = vunpack.c.l.b16 %v316
      %v412 = vunpack.c.l.b16 %v317
      %v413 = vpack.c.b16 %v410, %v409
      %v414 = vpack.c.b16 %v412, %v411
      %vm417 = vcmask 261120
      %v419 = vsel %vm417, %v389, 0
      %v422 = vsel %vm417, %v390, 0
      %v425 = vsel %vm417, %v391, 0
      %v428 = vsel %vm417, %v392, 0
      %v431 = vsel %vm417, %v393, 0
      %v434 = vsel %vm417, %v394, 0
      %v437 = vsel %vm417, %v395, 0
      %v440 = vsel %vm417, %v396, 0
      %v443 = vsel %vm417, %v397, 0
      %v446 = vsel %vm417, %v398, 0
      %v449 = vsel %vm417, %v399, 0
      %v452 = vsel %vm417, %v400, 0
      %v455 = vsel %vm417, %v401, 0
      %v458 = vsel %vm417, %v402, 0
      %v461 = vsel %vm417, %v403, 0
      %v464 = vsel %vm417, %v404, 0
      %466 = vmatprep.subr.bf16.mxu0 0
      %467 = vmatpush1.bf16.msra.mxu0 %v413
      %468 = vmatprep.subr.bf16.mxu0 0
      %469 = vmatpush1.bf16.msra.mxu0 %v414
      %470 = vmatprep.subr.bf16.mxu0 0
      %471 = vmatpush1.bf16.msra.mxu0 0
      %472 = vmatprep.subr.bf16.mxu0 0
      %473 = vmatpush1.bf16.msra.mxu0 0
      %474 = vmatprep.subr.bf16.mxu0 0
      %475 = vmatpush1.bf16.msra.mxu0 0
      %476 = vmatprep.subr.bf16.mxu0 0
      %477 = vmatpush1.bf16.msra.mxu0 0
      %478 = vmatprep.subr.bf16.mxu0 0
      %479 = vmatpush1.bf16.msra.mxu0 0
      %480 = vmatprep.subr.bf16.mxu0 0
      %481 = vmatpush1.bf16.msra.mxu0 0
      %482 = vmatprep.subr.bf16.mxu0 0
      %483 = vmatpush1.bf16.msra.mxu0 0
      %484 = vmatprep.subr.bf16.mxu0 0
      %485 = vmatpush1.bf16.msra.mxu0 0
      %486 = vmatprep.subr.bf16.mxu0 0
      %487 = vmatpush1.bf16.msra.mxu0 0
      %488 = vmatprep.subr.bf16.mxu0 0
      %489 = vmatpush1.bf16.msra.mxu0 0
      %490 = vmatprep.subr.bf16.mxu0 0
      %491 = vmatpush1.bf16.msra.mxu0 0
      %492 = vmatprep.subr.bf16.mxu0 0
      %493 = vmatpush1.bf16.msra.mxu0 0
      %494 = vmatprep.subr.bf16.mxu0 0
      %495 = vmatpush1.bf16.msra.mxu0 0
      %496 = vmatprep.subr.bf16.mxu0 0
      %497 = vmatpush1.bf16.msra.mxu0 0
      %498 = vmatprep.mubr.bf16.mxu0 0
      %499 = vmatmul.mubr.bf16.gmra.mrb[0].mxu0 %v419
      %v500 = vpop.f32.mrb[0].mxu0
      %v501 = vadd.f32 %v323, %v500
      %v502 = vpop.f32.mrb[0].mxu0
      %v503 = vpop.f32.mrb[0].mxu0
      %v504 = vadd.f32 %v323, %v503
      %v505 = vpop.f32.mrb[0].mxu0
      %506 = vmatprep.mubr.bf16.mxu0 0
      %507 = vmatmul.mubr.bf16.gmra.mrb[0].mxu0 %v422
      %v508 = vpop.f32.mrb[0].mxu0
      %v509 = vadd.f32 %v323, %v508
      %v510 = vpop.f32.mrb[0].mxu0
      %v511 = vpop.f32.mrb[0].mxu0
      %v512 = vadd.f32 %v323, %v511
      %v513 = vpop.f32.mrb[0].mxu0
      %514 = vmatprep.mubr.bf16.mxu0 0
      %515 = vmatmul.mubr.bf16.gmra.mrb[0].mxu0 %v425
      %v516 = vpop.f32.mrb[0].mxu0
      %v517 = vadd.f32 %v323, %v516
      %v518 = vpop.f32.mrb[0].mxu0
      %v519 = vpop.f32.mrb[0].mxu0
      %v520 = vadd.f32 %v323, %v519
      %v521 = vpop.f32.mrb[0].mxu0
      %522 = vmatprep.mubr.bf16.mxu0 0
      %523 = vmatmul.mubr.bf16.gmra.mrb[0].mxu0 %v428
      %v524 = vpop.f32.mrb[0].mxu0
      %v525 = vadd.f32 %v323, %v524
      %v526 = vpop.f32.mrb[0].mxu0
      %v527 = vpop.f32.mrb[0].mxu0
      %v528 = vadd.f32 %v323, %v527
      %v529 = vpop.f32.mrb[0].mxu0
      %530 = vmatprep.mubr.bf16.mxu0 0
      %531 = vmatmul.mubr.bf16.gmra.mrb[0].mxu0 %v431
      %v532 = vpop.f32.mrb[0].mxu0
      %v533 = vadd.f32 %v323, %v532
      %v534 = vpop.f32.mrb[0].mxu0
      %v535 = vpop.f32.mrb[0].mxu0
      %v536 = vadd.f32 %v323, %v535
      %v537 = vpop.f32.mrb[0].mxu0
      %538 = vmatprep.mubr.bf16.mxu0 0
      %539 = vmatmul.mubr.bf16.gmra.mrb[0].mxu0 %v434
      %v540 = vpop.f32.mrb[0].mxu0
      %v541 = vadd.f32 %v323, %v540
      %v542 = vpop.f32.mrb[0].mxu0
      %v543 = vpop.f32.mrb[0].mxu0
      %v544 = vadd.f32 %v323, %v543
      %v545 = vpop.f32.mrb[0].mxu0
      %546 = vmatprep.mubr.bf16.mxu0 0
      %547 = vmatmul.mubr.bf16.gmra.mrb[0].mxu0 %v437
      %v548 = vpop.f32.mrb[0].mxu0
      %v549 = vadd.f32 %v323, %v548
      %v550 = vpop.f32.mrb[0].mxu0
      %v551 = vpop.f32.mrb[0].mxu0
      %v552 = vadd.f32 %v323, %v551
      %v553 = vpop.f32.mrb[0].mxu0
      %554 = vmatprep.mubr.bf16.mxu0 0
      %555 = vmatmul.mubr.bf16.gmra.mrb[0].mxu0 %v440
      %v556 = vpop.f32.mrb[0].mxu0
      %v557 = vadd.f32 %v323, %v556
      %v558 = vpop.f32.mrb[0].mxu0
      %v559 = vpop.f32.mrb[0].mxu0
      %v560 = vadd.f32 %v323, %v559
      %v561 = vpop.f32.mrb[0].mxu0
      %562 = vmatprep.mubr.bf16.mxu0 0
      %563 = vmatmul.mubr.bf16.gmra.mrb[0].mxu0 %v443
      %v564 = vpop.f32.mrb[0].mxu0
      %v565 = vadd.f32 %v323, %v564
      %v566 = vpop.f32.mrb[0].mxu0
      %v567 = vpop.f32.mrb[0].mxu0
      %v568 = vadd.f32 %v323, %v567
      %v569 = vpop.f32.mrb[0].mxu0
      %570 = vmatprep.mubr.bf16.mxu0 0
      %571 = vmatmul.mubr.bf16.gmra.mrb[0].mxu0 %v446
      %v572 = vpop.f32.mrb[0].mxu0
      %v573 = vadd.f32 %v323, %v572
      %v574 = vpop.f32.mrb[0].mxu0
      %v575 = vpop.f32.mrb[0].mxu0
      %v576 = vadd.f32 %v323, %v575
      %v577 = vpop.f32.mrb[0].mxu0
      %578 = vmatprep.mubr.bf16.mxu0 0
      %579 = vmatmul.mubr.bf16.gmra.mrb[0].mxu0 %v449
      %v580 = vpop.f32.mrb[0].mxu0
      %v581 = vadd.f32 %v323, %v580
      %v582 = vpop.f32.mrb[0].mxu0
      %v583 = vpop.f32.mrb[0].mxu0
      %v584 = vadd.f32 %v323, %v583
      %v585 = vpop.f32.mrb[0].mxu0
      %586 = vmatprep.mubr.bf16.mxu0 0
      %587 = vmatmul.mubr.bf16.gmra.mrb[0].mxu0 %v452
      %v588 = vpop.f32.mrb[0].mxu0
      %v589 = vadd.f32 %v323, %v588
      %v590 = vpop.f32.mrb[0].mxu0
      %v591 = vpop.f32.mrb[0].mxu0
      %v592 = vadd.f32 %v323, %v591
      %v593 = vpop.f32.mrb[0].mxu0
      %594 = vmatprep.mubr.bf16.mxu0 0
      %595 = vmatmul.mubr.bf16.gmra.mrb[0].mxu0 %v455
      %v596 = vpop.f32.mrb[0].mxu0
      %v597 = vadd.f32 %v323, %v596
      %v598 = vpop.f32.mrb[0].mxu0
      %v599 = vpop.f32.mrb[0].mxu0
      %v600 = vadd.f32 %v323, %v599
      %v601 = vpop.f32.mrb[0].mxu0
      %602 = vmatprep.mubr.bf16.mxu0 0
      %603 = vmatmul.mubr.bf16.gmra.mrb[0].mxu0 %v458
      %v604 = vpop.f32.mrb[0].mxu0
      %v605 = vadd.f32 %v323, %v604
      %v606 = vpop.f32.mrb[0].mxu0
      %v607 = vpop.f32.mrb[0].mxu0
      %v608 = vadd.f32 %v323, %v607
      %v609 = vpop.f32.mrb[0].mxu0
      %610 = vmatprep.mubr.bf16.mxu0 0
      %611 = vmatmul.mubr.bf16.gmra.mrb[0].mxu0 %v461
      %v612 = vpop.f32.mrb[0].mxu0
      %v613 = vadd.f32 %v323, %v612
      %v614 = vpop.f32.mrb[0].mxu0
      %v615 = vpop.f32.mrb[0].mxu0
      %v616 = vadd.f32 %v323, %v615
      %v617 = vpop.f32.mrb[0].mxu0
      %618 = vmatprep.mubr.bf16.mxu0 0
      %619 = vmatmul.mubr.bf16.gmra.mrb[0].mxu0 %v464
      %v620 = vpop.f32.mrb[0].mxu0
      %v621 = vadd.f32 %v323, %v620
      %v622 = vpop.f32.mrb[0].mxu0
      %v623 = vpop.f32.mrb[0].mxu0
      %v624 = vadd.f32 %v323, %v623
      %v625 = vpop.f32.mrb[0].mxu0
      %626 = vdwg.mxu0
      %v627 = vmax.f32 %v501, 0.0
      %v628 = vmax.f32 %v504, 0.0
      %v629 = vmax.f32 %v509, 0.0
      %v630 = vmax.f32 %v512, 0.0
      %v631 = vmax.f32 %v517, 0.0
      %v632 = vmax.f32 %v520, 0.0
      %v633 = vmax.f32 %v525, 0.0
      %v634 = vmax.f32 %v528, 0.0
      %v635 = vmax.f32 %v533, 0.0
      %v636 = vmax.f32 %v536, 0.0
      %v637 = vmax.f32 %v541, 0.0
      %v638 = vmax.f32 %v544, 0.0
      %v639 = vmax.f32 %v549, 0.0
      %v640 = vmax.f32 %v552, 0.0
      %v641 = vmax.f32 %v557, 0.0
      %v642 = vmax.f32 %v560, 0.0
      %v643 = vmax.f32 %v565, 0.0
      %v644 = vmax.f32 %v568, 0.0
      %v645 = vmax.f32 %v573, 0.0
      %v646 = vmax.f32 %v576, 0.0
      %v647 = vmax.f32 %v581, 0.0
      %v648 = vmax.f32 %v584, 0.0
      %v649 = vmax.f32 %v589, 0.0
      %v650 = vmax.f32 %v592, 0.0
      %v651 = vmax.f32 %v597, 0.0
      %v652 = vmax.f32 %v600, 0.0
      %v653 = vmax.f32 %v605, 0.0
      %v654 = vmax.f32 %v608, 0.0
      %v655 = vmax.f32 %v613, 0.0
      %v656 = vmax.f32 %v616, 0.0
      %v657 = vmax.f32 %v621, 0.0
      %v658 = vmax.f32 %v624, 0.0
      %v659 = vpack.c.bf16 %v628, %v627
      %v660 = vpack.c.bf16 %v630, %v629
      %v661 = vpack.c.bf16 %v632, %v631
      %v662 = vpack.c.bf16 %v634, %v633
      %v663 = vpack.c.bf16 %v636, %v635
      %v664 = vpack.c.bf16 %v638, %v637
      %v665 = vpack.c.bf16 %v640, %v639
      %v666 = vpack.c.bf16 %v642, %v641
      %v667 = vpack.c.bf16 %v644, %v643
      %v668 = vpack.c.bf16 %v646, %v645
      %v669 = vpack.c.bf16 %v648, %v647
      %v670 = vpack.c.bf16 %v650, %v649
      %v671 = vpack.c.bf16 %v652, %v651
      %v672 = vpack.c.bf16 %v654, %v653
      %v673 = vpack.c.bf16 %v656, %v655
      %v674 = vpack.c.bf16 %v658, %v657
      %v675 = vld [vmem:[%s3] sm:$0xf]
      %v676 = vld [vmem:[%s3 + $0x4] sm:$0xf]
      %v677 = vld [vmem:[%s3 + $0x8] sm:$0xf]
      %v678 = vld [vmem:[%s3 + $0xc] sm:$0xf]
      %v679 = vld [vmem:[%s3 + $0x10] sm:$0xf]
      %v680 = vld [vmem:[%s3 + $0x14] sm:$0xf]
      %v681 = vld [vmem:[%s3 + $0x18] sm:$0xf]
      %v682 = vld [vmem:[%s3 + $0x1c] sm:$0xf]
      %v683 = vld [vmem:[%s3 + $0x20] sm:$0xf]
      %v684 = vld [vmem:[%s3 + $0x24] sm:$0xf]
      %v685 = vld [vmem:[%s3 + $0x28] sm:$0xf]
      %v686 = vld [vmem:[%s3 + $0x2c] sm:$0xf]
      %v687 = vld [vmem:[%s3 + $0x30] sm:$0xf]
      %v688 = vld [vmem:[%s3 + $0x34] sm:$0xf]
      %v689 = vld [vmem:[%s3 + $0x38] sm:$0xf]
      %v690 = vld [vmem:[%s3 + $0x3c] sm:$0xf]
      %v691 = vld [vmem:[%s4] sm:$0x1]
      %v693 = vlaneseq
      %v694 = vshrl.u32 %v693, 7
      %v695 = vsub.s32 0, %v694
      %v696 = vrot.slane %v691, %v695
      %v714 = vunpack.c.l.b16 %v675
      %v715 = vunpack.c.l.b16 %v676
      %v716 = vunpack.c.l.b16 %v677
      %v717 = vunpack.c.l.b16 %v678
      %v718 = vunpack.c.l.b16 %v679
      %v719 = vunpack.c.l.b16 %v680
      %v720 = vunpack.c.l.b16 %v681
      %v721 = vunpack.c.l.b16 %v682
      %v722 = vunpack.c.l.b16 %v683
      %v723 = vunpack.c.l.b16 %v684
      %v724 = vunpack.c.l.b16 %v685
      %v725 = vunpack.c.l.b16 %v686
      %v726 = vunpack.c.l.b16 %v687
      %v727 = vunpack.c.l.b16 %v688
      %v728 = vunpack.c.l.b16 %v689
      %v729 = vunpack.c.l.b16 %v690
      %v730 = vpack.c.b16 %v715, %v714
      %v731 = vpack.c.b16 %v717, %v716
      %v732 = vpack.c.b16 %v719, %v718
      %v733 = vpack.c.b16 %v721, %v720
      %v734 = vpack.c.b16 %v723, %v722
      %v735 = vpack.c.b16 %v725, %v724
      %v736 = vpack.c.b16 %v727, %v726
      %v737 = vpack.c.b16 %v729, %v728
      %746 = vmatprep.subr.bf16.mxu0 0
      %747 = vmatpush1.bf16.msra.mxu0 %v730
      %748 = vmatprep.subr.bf16.mxu0 0
      %749 = vmatpush1.bf16.msra.mxu0 %v731
      %750 = vmatprep.subr.bf16.mxu0 0
      %751 = vmatpush1.bf16.msra.mxu0 %v732
      %752 = vmatprep.subr.bf16.mxu0 0
      %753 = vmatpush1.bf16.msra.mxu0 %v733
      %754 = vmatprep.subr.bf16.mxu0 0
      %755 = vmatpush1.bf16.msra.mxu0 %v734
      %756 = vmatprep.subr.bf16.mxu0 0
      %757 = vmatpush1.bf16.msra.mxu0 %v735
      %758 = vmatprep.subr.bf16.mxu0 0
      %759 = vmatpush1.bf16.msra.mxu0 %v736
      %760 = vmatprep.subr.bf16.mxu0 0
      %761 = vmatpush1.bf16.msra.mxu0 %v737
      %762 = vmatprep.subr.bf16.mxu0 0
      %763 = vmatpush1.bf16.msra.mxu0 0
      %764 = vmatprep.subr.bf16.mxu0 0
      %765 = vmatpush1.bf16.msra.mxu0 0
      %766 = vmatprep.subr.bf16.mxu0 0
      %767 = vmatpush1.bf16.msra.mxu0 0
      %768 = vmatprep.subr.bf16.mxu0 0
      %769 = vmatpush1.bf16.msra.mxu0 0
      %770 = vmatprep.subr.bf16.mxu0 0
      %771 = vmatpush1.bf16.msra.mxu0 0
      %772 = vmatprep.subr.bf16.mxu0 0
      %773 = vmatpush1.bf16.msra.mxu0 0
      %774 = vmatprep.subr.bf16.mxu0 0
      %775 = vmatpush1.bf16.msra.mxu0 0
      %776 = vmatprep.subr.bf16.mxu0 0
      %777 = vmatpush1.bf16.msra.mxu0 0
      %778 = vmatprep.mubr.bf16.mxu0 0
      %779 = vmatmul.mubr.bf16.gmra.mrb[0].mxu0 %v659
      %v780 = vpop.f32.mrb[0].mxu0
      %v781 = vadd.f32 %v696, %v780
      %v782 = vpop.f32.mrb[0].mxu0
      %v783 = vpop.f32.mrb[0].mxu0
      %v784 = vadd.f32 %v696, %v783
      %v785 = vpop.f32.mrb[0].mxu0
      %786 = vmatprep.mubr.bf16.mxu0 0
      %787 = vmatmul.mubr.bf16.gmra.mrb[0].mxu0 %v660
      %v788 = vpop.f32.mrb[0].mxu0
      %v789 = vadd.f32 %v696, %v788
      %v790 = vpop.f32.mrb[0].mxu0
      %v791 = vpop.f32.mrb[0].mxu0
      %v792 = vadd.f32 %v696, %v791
      %v793 = vpop.f32.mrb[0].mxu0
      %794 = vmatprep.mubr.bf16.mxu0 0
      %795 = vmatmul.mubr.bf16.gmra.mrb[0].mxu0 %v661
      %v796 = vpop.f32.mrb[0].mxu0
      %v797 = vadd.f32 %v696, %v796
      %v798 = vpop.f32.mrb[0].mxu0
      %v799 = vpop.f32.mrb[0].mxu0
      %v800 = vadd.f32 %v696, %v799
      %v801 = vpop.f32.mrb[0].mxu0
      %802 = vmatprep.mubr.bf16.mxu0 0
      %803 = vmatmul.mubr.bf16.gmra.mrb[0].mxu0 %v662
      %v804 = vpop.f32.mrb[0].mxu0
      %v805 = vadd.f32 %v696, %v804
      %v806 = vpop.f32.mrb[0].mxu0
      %v807 = vpop.f32.mrb[0].mxu0
      %v808 = vadd.f32 %v696, %v807
      %v809 = vpop.f32.mrb[0].mxu0
      %810 = vmatprep.mubr.bf16.mxu0 0
      %811 = vmatmul.mubr.bf16.gmra.mrb[0].mxu0 %v663
      %v812 = vpop.f32.mrb[0].mxu0
      %v813 = vadd.f32 %v696, %v812
      %v814 = vpop.f32.mrb[0].mxu0
      %v815 = vpop.f32.mrb[0].mxu0
      %v816 = vadd.f32 %v696, %v815
      %v817 = vpop.f32.mrb[0].mxu0
      %818 = vmatprep.mubr.bf16.mxu0 0
      %819 = vmatmul.mubr.bf16.gmra.mrb[0].mxu0 %v664
      %v820 = vpop.f32.mrb[0].mxu0
      %v821 = vadd.f32 %v696, %v820
      %v822 = vpop.f32.mrb[0].mxu0
      %v823 = vpop.f32.mrb[0].mxu0
      %v824 = vadd.f32 %v696, %v823
      %v825 = vpop.f32.mrb[0].mxu0
      %826 = vmatprep.mubr.bf16.mxu0 0
      %827 = vmatmul.mubr.bf16.gmra.mrb[0].mxu0 %v665
      %v828 = vpop.f32.mrb[0].mxu0
      %v829 = vadd.f32 %v696, %v828
      %v830 = vpop.f32.mrb[0].mxu0
      %v831 = vpop.f32.mrb[0].mxu0
      %v832 = vadd.f32 %v696, %v831
      %v833 = vpop.f32.mrb[0].mxu0
      %834 = vmatprep.mubr.bf16.mxu0 0
      %835 = vmatmul.mubr.bf16.gmra.mrb[0].mxu0 %v666
      %v836 = vpop.f32.mrb[0].mxu0
      %v837 = vadd.f32 %v696, %v836
      %v838 = vpop.f32.mrb[0].mxu0
      %v839 = vpop.f32.mrb[0].mxu0
      %v840 = vadd.f32 %v696, %v839
      %v841 = vpop.f32.mrb[0].mxu0
      %842 = vmatprep.mubr.bf16.mxu0 0
      %843 = vmatmul.mubr.bf16.gmra.mrb[0].mxu0 %v667
      %v844 = vpop.f32.mrb[0].mxu0
      %v845 = vadd.f32 %v696, %v844
      %v846 = vpop.f32.mrb[0].mxu0
      %v847 = vpop.f32.mrb[0].mxu0
      %v848 = vadd.f32 %v696, %v847
      %v849 = vpop.f32.mrb[0].mxu0
      %850 = vmatprep.mubr.bf16.mxu0 0
      %851 = vmatmul.mubr.bf16.gmra.mrb[0].mxu0 %v668
      %v852 = vpop.f32.mrb[0].mxu0
      %v853 = vadd.f32 %v696, %v852
      %v854 = vpop.f32.mrb[0].mxu0
      %v855 = vpop.f32.mrb[0].mxu0
      %v856 = vadd.f32 %v696, %v855
      %v857 = vpop.f32.mrb[0].mxu0
      %858 = vmatprep.mubr.bf16.mxu0 0
      %859 = vmatmul.mubr.bf16.gmra.mrb[0].mxu0 %v669
      %v860 = vpop.f32.mrb[0].mxu0
      %v861 = vadd.f32 %v696, %v860
      %v862 = vpop.f32.mrb[0].mxu0
      %v863 = vpop.f32.mrb[0].mxu0
      %v864 = vadd.f32 %v696, %v863
      %v865 = vpop.f32.mrb[0].mxu0
      %866 = vmatprep.mubr.bf16.mxu0 0
      %867 = vmatmul.mubr.bf16.gmra.mrb[0].mxu0 %v670
      %v868 = vpop.f32.mrb[0].mxu0
      %v869 = vadd.f32 %v696, %v868
      %v870 = vpop.f32.mrb[0].mxu0
      %v871 = vpop.f32.mrb[0].mxu0
      %v872 = vadd.f32 %v696, %v871
      %v873 = vpop.f32.mrb[0].mxu0
      %874 = vmatprep.mubr.bf16.mxu0 0
      %875 = vmatmul.mubr.bf16.gmra.mrb[0].mxu0 %v671
      %v876 = vpop.f32.mrb[0].mxu0
      %v877 = vadd.f32 %v696, %v876
      %v878 = vpop.f32.mrb[0].mxu0
      %v879 = vpop.f32.mrb[0].mxu0
      %v880 = vadd.f32 %v696, %v879
      %v881 = vpop.f32.mrb[0].mxu0
      %882 = vmatprep.mubr.bf16.mxu0 0
      %883 = vmatmul.mubr.bf16.gmra.mrb[0].mxu0 %v672
      %v884 = vpop.f32.mrb[0].mxu0
      %v885 = vadd.f32 %v696, %v884
      %v886 = vpop.f32.mrb[0].mxu0
      %v887 = vpop.f32.mrb[0].mxu0
      %v888 = vadd.f32 %v696, %v887
      %v889 = vpop.f32.mrb[0].mxu0
      %890 = vmatprep.mubr.bf16.mxu0 0
      %891 = vmatmul.mubr.bf16.gmra.mrb[0].mxu0 %v673
      %v892 = vpop.f32.mrb[0].mxu0
      %v893 = vadd.f32 %v696, %v892
      %v894 = vpop.f32.mrb[0].mxu0
      %v895 = vpop.f32.mrb[0].mxu0
      %v896 = vadd.f32 %v696, %v895
      %v897 = vpop.f32.mrb[0].mxu0
      %898 = vmatprep.mubr.bf16.mxu0 0
      %899 = vmatmul.mubr.bf16.gmra.mrb[0].mxu0 %v674
      %v900 = vpop.f32.mrb[0].mxu0
      %v901 = vadd.f32 %v696, %v900
      %v902 = vpop.f32.mrb[0].mxu0
      %v903 = vpop.f32.mrb[0].mxu0
      %v904 = vadd.f32 %v696, %v903
      %v905 = vpop.f32.mrb[0].mxu0
      %906 = vdwg.mxu0
      %v907 = vmax.f32 %v781, 0.0
      %v908 = vmax.f32 %v784, 0.0
      %v909 = vmax.f32 %v789, 0.0
      %v910 = vmax.f32 %v792, 0.0
      %v911 = vmax.f32 %v797, 0.0
      %v912 = vmax.f32 %v800, 0.0
      %v913 = vmax.f32 %v805, 0.0
      %v914 = vmax.f32 %v808, 0.0
      %v915 = vmax.f32 %v813, 0.0
      %v916 = vmax.f32 %v816, 0.0
      %v917 = vmax.f32 %v821, 0.0
      %v918 = vmax.f32 %v824, 0.0
      %v919 = vmax.f32 %v829, 0.0
      %v920 = vmax.f32 %v832, 0.0
      %v921 = vmax.f32 %v837, 0.0
      %v922 = vmax.f32 %v840, 0.0
      %v923 = vmax.f32 %v845, 0.0
      %v924 = vmax.f32 %v848, 0.0
      %v925 = vmax.f32 %v853, 0.0
      %v926 = vmax.f32 %v856, 0.0
      %v927 = vmax.f32 %v861, 0.0
      %v928 = vmax.f32 %v864, 0.0
      %v929 = vmax.f32 %v869, 0.0
      %v930 = vmax.f32 %v872, 0.0
      %v931 = vmax.f32 %v877, 0.0
      %v932 = vmax.f32 %v880, 0.0
      %v933 = vmax.f32 %v885, 0.0
      %v934 = vmax.f32 %v888, 0.0
      %v935 = vmax.f32 %v893, 0.0
      %v936 = vmax.f32 %v896, 0.0
      %v937 = vmax.f32 %v901, 0.0
      %v938 = vmax.f32 %v904, 0.0
      %939 = vxpose.xlu0.b32.start [1/16] %v907, 128
      %940 = vxpose.xlu0.b32.cont [2/16] %v908, 128
      %941 = vxpose.xlu0.b32.cont [3/16] %v909, 128
      %942 = vxpose.xlu0.b32.cont [4/16] %v910, 128
      %943 = vxpose.xlu0.b32.cont [5/16] %v911, 128
      %944 = vxpose.xlu0.b32.cont [6/16] %v912, 128
      %945 = vxpose.xlu0.b32.cont [7/16] %v913, 128
      %946 = vxpose.xlu0.b32.cont [8/16] %v914, 128
      %947 = vxpose.xlu0.b32.cont [9/16] %v915, 128
      %948 = vxpose.xlu0.b32.cont [10/16] %v916, 128
      %949 = vxpose.xlu0.b32.cont [11/16] %v917, 128
      %950 = vxpose.xlu0.b32.cont [12/16] %v918, 128
      %951 = vxpose.xlu0.b32.cont [13/16] %v919, 128
      %952 = vxpose.xlu0.b32.cont [14/16] %v920, 128
      %953 = vxpose.xlu0.b32.cont [15/16] %v921, 128
      %954 = vxpose.xlu0.b32.end [16/16] %v922, 128
      %v955 = vpop.trf.xlu0
      %v956 = vpop.trf.xlu0
      %v957 = vpop.trf.xlu0
      %v958 = vpop.trf.xlu0
      %v959 = vpop.trf.xlu0
      %v960 = vpop.trf.xlu0
      %v961 = vpop.trf.xlu0
      %v962 = vpop.trf.xlu0
      %v963 = vpop.trf.xlu0
      %v964 = vpop.trf.xlu0
      %v965 = vpop.trf.xlu0
      %v966 = vpop.trf.xlu0
      %v967 = vpop.trf.xlu0
      %v968 = vpop.trf.xlu0
      %v969 = vpop.trf.xlu0
      %v970 = vpop.trf.xlu0
      %971 = vxpose.xlu0.b32.start [1/16] %v923, 128
      %972 = vxpose.xlu0.b32.cont [2/16] %v924, 128
      %973 = vxpose.xlu0.b32.cont [3/16] %v925, 128
      %974 = vxpose.xlu0.b32.cont [4/16] %v926, 128
      %975 = vxpose.xlu0.b32.cont [5/16] %v927, 128
      %976 = vxpose.xlu0.b32.cont [6/16] %v928, 128
      %977 = vxpose.xlu0.b32.cont [7/16] %v929, 128
      %978 = vxpose.xlu0.b32.cont [8/16] %v930, 128
      %979 = vxpose.xlu0.b32.cont [9/16] %v931, 128
      %980 = vxpose.xlu0.b32.cont [10/16] %v932, 128
      %981 = vxpose.xlu0.b32.cont [11/16] %v933, 128
      %982 = vxpose.xlu0.b32.cont [12/16] %v934, 128
      %983 = vxpose.xlu0.b32.cont [13/16] %v935, 128
      %984 = vxpose.xlu0.b32.cont [14/16] %v936, 128
      %985 = vxpose.xlu0.b32.cont [15/16] %v937, 128
      %986 = vxpose.xlu0.b32.end [16/16] %v938, 128
      %v987 = vpop.trf.xlu0
      %v988 = vpop.trf.xlu0
      %v989 = vpop.trf.xlu0
      %v990 = vpop.trf.xlu0
      %v991 = vpop.trf.xlu0
      %v992 = vpop.trf.xlu0
      %v993 = vpop.trf.xlu0
      %v994 = vpop.trf.xlu0
      %v995 = vpop.trf.xlu0
      %v996 = vpop.trf.xlu0
      %v997 = vpop.trf.xlu0
      %v998 = vpop.trf.xlu0
      %v999 = vpop.trf.xlu0
      %v1000 = vpop.trf.xlu0
      %v1001 = vpop.trf.xlu0
      %v1002 = vpop.trf.xlu0
      %v1003 = vld [vmem:[%s5] sm:$0xff]
      %v1004 = vld [vmem:[%s5 + $0x8] sm:$0xff]
      %v1005 = vld [vmem:[%s5 + $0x10] sm:$0xff]
      %v1006 = vld [vmem:[%s5 + $0x18] sm:$0xff]
      %v1007 = vld [vmem:[%s5 + $0x20] sm:$0xff]
      %v1008 = vld [vmem:[%s5 + $0x28] sm:$0xff]
      %v1009 = vld [vmem:[%s5 + $0x30] sm:$0xff]
      %v1010 = vld [vmem:[%s5 + $0x38] sm:$0xff]
      %v1011 = vld [vmem:[%s5 + $0x40] sm:$0xff]
      %v1012 = vld [vmem:[%s5 + $0x48] sm:$0xff]
      %v1013 = vld [vmem:[%s5 + $0x50] sm:$0xff]
      %v1014 = vld [vmem:[%s5 + $0x58] sm:$0xff]
      %v1015 = vld [vmem:[%s5 + $0x60] sm:$0xff]
      %v1016 = vld [vmem:[%s5 + $0x68] sm:$0xff]
      %v1017 = vld [vmem:[%s5 + $0x70] sm:$0xff]
      %v1018 = vld [vmem:[%s5 + $0x78] sm:$0xff]
      %1020 = vset.pattern.permute.xlu0 0
      %1021 = vperm.xlu0 %1020, %v1003
      %v1022 = vpop.permute.xlu0 %1021
      %1025 = vset.pattern.permute.xlu0 0
      %1026 = vperm.xlu0 %1025, %v1004
      %v1027 = vpop.permute.xlu0 %1026
      %1030 = vset.pattern.permute.xlu0 0
      %1031 = vperm.xlu0 %1030, %v1005
      %v1032 = vpop.permute.xlu0 %1031
      %1035 = vset.pattern.permute.xlu0 0
      %1036 = vperm.xlu0 %1035, %v1006
      %v1037 = vpop.permute.xlu0 %1036
      %1040 = vset.pattern.permute.xlu0 0
      %1041 = vperm.xlu0 %1040, %v1007
      %v1042 = vpop.permute.xlu0 %1041
      %1045 = vset.pattern.permute.xlu0 0
      %1046 = vperm.xlu0 %1045, %v1008
      %v1047 = vpop.permute.xlu0 %1046
      %1050 = vset.pattern.permute.xlu0 0
      %1051 = vperm.xlu0 %1050, %v1009
      %v1052 = vpop.permute.xlu0 %1051
      %1055 = vset.pattern.permute.xlu0 0
      %1056 = vperm.xlu0 %1055, %v1010
      %v1057 = vpop.permute.xlu0 %1056
      %1060 = vset.pattern.permute.xlu0 0
      %1061 = vperm.xlu0 %1060, %v1011
      %v1062 = vpop.permute.xlu0 %1061
      %1065 = vset.pattern.permute.xlu0 0
      %1066 = vperm.xlu0 %1065, %v1012
      %v1067 = vpop.permute.xlu0 %1066
      %1070 = vset.pattern.permute.xlu0 0
      %1071 = vperm.xlu0 %1070, %v1013
      %v1072 = vpop.permute.xlu0 %1071
      %1075 = vset.pattern.permute.xlu0 0
      %1076 = vperm.xlu0 %1075, %v1014
      %v1077 = vpop.permute.xlu0 %1076
      %1080 = vset.pattern.permute.xlu0 0
      %1081 = vperm.xlu0 %1080, %v1015
      %v1082 = vpop.permute.xlu0 %1081
      %1085 = vset.pattern.permute.xlu0 0
      %1086 = vperm.xlu0 %1085, %v1016
      %v1087 = vpop.permute.xlu0 %1086
      %1090 = vset.pattern.permute.xlu0 0
      %1091 = vperm.xlu0 %1090, %v1017
      %v1092 = vpop.permute.xlu0 %1091
      %1095 = vset.pattern.permute.xlu0 0
      %1096 = vperm.xlu0 %1095, %v1018
      %v1097 = vpop.permute.xlu0 %1096
      %v1099 = vmul.f32 %v955, %v1022
      %v1100 = vmul.f32 %v987, %v1022
      %v1101 = vmul.f32 %v956, %v1027
      %v1102 = vmul.f32 %v988, %v1027
      %v1103 = vmul.f32 %v957, %v1032
      %v1104 = vmul.f32 %v989, %v1032
      %v1105 = vmul.f32 %v958, %v1037
      %v1106 = vmul.f32 %v990, %v1037
      %v1107 = vmul.f32 %v959, %v1042
      %v1108 = vmul.f32 %v991, %v1042
      %v1109 = vmul.f32 %v960, %v1047
      %v1110 = vmul.f32 %v992, %v1047
      %v1111 = vmul.f32 %v961, %v1052
      %v1112 = vmul.f32 %v993, %v1052
      %v1113 = vmul.f32 %v962, %v1057
      %v1114 = vmul.f32 %v994, %v1057
      %v1115 = vmul.f32 %v963, %v1062
      %v1116 = vmul.f32 %v995, %v1062
      %v1117 = vmul.f32 %v964, %v1067
      %v1118 = vmul.f32 %v996, %v1067
      %v1119 = vmul.f32 %v965, %v1072
      %v1120 = vmul.f32 %v997, %v1072
      %v1121 = vmul.f32 %v966, %v1077
      %v1122 = vmul.f32 %v998, %v1077
      %v1123 = vmul.f32 %v967, %v1082
      %v1124 = vmul.f32 %v999, %v1082
      %v1125 = vmul.f32 %v968, %v1087
      %v1126 = vmul.f32 %v1000, %v1087
      %v1127 = vmul.f32 %v969, %v1092
      %v1128 = vmul.f32 %v1001, %v1092
      %v1129 = vmul.f32 %v970, %v1097
      %v1130 = vmul.f32 %v1002, %v1097
      %v1131 = vadd.f32 %v1099, %v1101
      %v1132 = vadd.f32 %v1131, %v1103
      %v1133 = vadd.f32 %v1132, %v1105
      %v1134 = vadd.f32 %v1133, %v1107
      %v1135 = vadd.f32 %v1134, %v1109
      %v1136 = vadd.f32 %v1135, %v1111
      %v1137 = vadd.f32 %v1136, %v1113
      %v1138 = vadd.f32 %v1137, %v1115
      %v1139 = vadd.f32 %v1138, %v1117
      %v1140 = vadd.f32 %v1139, %v1119
      %v1141 = vadd.f32 %v1140, %v1121
      %v1142 = vadd.f32 %v1141, %v1123
      %v1143 = vadd.f32 %v1142, %v1125
      %v1144 = vadd.f32 %v1143, %v1127
      %v1145 = vadd.f32 %v1144, %v1129
      %v1146 = vrot.slane %v1145, 4
      %v1147 = vadd.f32 %v1145, %v1146
      %v1148 = vrot.slane %v1147, 2
      %v1149 = vadd.f32 %v1147, %v1148
      %v1150 = vrot.slane %v1149, 1
      %v1151 = vadd.f32 %v1149, %v1150
      %v1152 = vadd.f32 %v1100, %v1102
      %v1153 = vadd.f32 %v1152, %v1104
      %v1154 = vadd.f32 %v1153, %v1106
      %v1155 = vadd.f32 %v1154, %v1108
      %v1156 = vadd.f32 %v1155, %v1110
      %v1157 = vadd.f32 %v1156, %v1112
      %v1158 = vadd.f32 %v1157, %v1114
      %v1159 = vadd.f32 %v1158, %v1116
      %v1160 = vadd.f32 %v1159, %v1118
      %v1161 = vadd.f32 %v1160, %v1120
      %v1162 = vadd.f32 %v1161, %v1122
      %v1163 = vadd.f32 %v1162, %v1124
      %v1164 = vadd.f32 %v1163, %v1126
      %v1165 = vadd.f32 %v1164, %v1128
      %v1166 = vadd.f32 %v1165, %v1130
      %v1167 = vrot.slane %v1166, 4
      %v1168 = vadd.f32 %v1166, %v1167
      %v1169 = vrot.slane %v1168, 2
      %v1170 = vadd.f32 %v1168, %v1169
      %v1171 = vrot.slane %v1170, 1
      %v1172 = vadd.f32 %v1170, %v1171
      %v1173 = vld [vmem:[#allocation2] sm:$0x1]
      %1175 = vset.pattern.permute.xlu0 0
      %1176 = vperm.xlu0 %1175, %v1173
      %v1177 = vpop.permute.xlu0 %1176
      %v1179 = vlaneseq
      %v1180 = vshrl.u32 %v1179, 7
      %v1181 = vsub.s32 0, %v1180
      %v1182 = vrot.slane %v1177, %v1181
      %v1183 = vadd.f32 %v1151, %v1182
      %v1184 = vadd.f32 %v1172, %v1182
      %v1187 = vcombine.low %v1183, %v1184
      %v1189 = vunpack.c.l.s4 1966171168
      %v1190 = vunpack.c.0.s8 %v1189
      %v1191 = vlaneseq
      %v1192 = vshrl.u32 %v1191, 7
      %v1193 = vsub.s32 %v1190, %v1192
      %v1194 = vrot.slane %v1187, %v1193
      %v1196 = vunpack.c.l.s4 1966171168
      %v1197 = vunpack.c.0.s8 %v1196
      %v1198 = vlaneseq
      %v1199 = vshrl.u32 %v1198, 7
      %v1200 = vsub.s32 %v1197, %v1199
      %v1201 = vrot.slane %v1194, %v1200
      %v1203 = vlaneseq
      %vm1204 = vcmp.ge.s32.totalorder %v1203, 0
      %vm1205 = vcmp.lt.s32.totalorder %v1203, 256
      %vm1206 = vmand %vm1204, %vm1205
      %1207 = vst.msk [vmem:[%s280] sm:$0x3] %vm1206, %v1201
      %p1208 = scmp.lt.s32.totalorder %s20, 1
      %s1209 = scalar_select %p1208, %s20, 1
      %s1210 = smul.addr %s1209, 2
      %s1211 = scalar_lea.vmem %s7, %s1210
      // Predicated region
      $region49: #{mlp_forward.1} parent=47 // pred_check
        %p1212 = pneg %p190
      $region50: #{mlp_forward.1} parent=47 // pred_check_branch
        %1214 = sbr.rel (%p1212) target = $region52
      $region51: #{mlp_forward.1} parent=47 // pred_region
        _
      $region52: #{mlp_forward.1} parent=47 // pred_fallthru
        _
    $region48: #{mlp_forward.1} parent=5 // pred_fallthru
      _
    %p1215 = scmp.le.s32.totalorder 2, %s15
    // Predicated region
    $region53: #{mlp_forward.1} parent=5 // pred_check
      %p1216 = pneg %p1215
    $region54: #{mlp_forward.1} parent=5 // pred_check_branch
      %1218 = sbr.rel (%p1216) target = $region56
    $region55: #{mlp_forward.1} parent=5 // pred_region
      %s1219 = ssub.s32 %s15, 2
      // Predicated region
      $region57: #{mlp_forward.1} parent=55 // pred_check
        %p1220 = pneg %p196
      $region58: #{mlp_forward.1} parent=55 // pred_check_branch
        %1222 = sbr.rel (%p1220) target = $region60
      $region59: #{mlp_forward.1} parent=55 // pred_region
        %p1223 = scmp.lt.s32.totalorder %s21, 1
        %s1224 = scalar_select %p1223, %s21, 1
        %s1225 = smul.addr %s1224, 2
        %s1226 = scalar_lea.vmem %s7, %s1225
      $region60: #{mlp_forward.1} parent=55 // pred_fallthru
        _
    $region56: #{mlp_forward.1} parent=5 // pred_fallthru
      _
  $region6: #{mlp_forward.1} parent=0 // loop_footer
    %s19 = sadd.s32 1, %s15
  $region7: #{mlp_forward.1} parent=0 // loop_footer_branch
    %14 = sbr.rel target = $region3
  $region8: #{mlp_forward.1} parent=0 // loop_exit
    _

</llo_original>
